<compile_context>
chip_gen: v7x
topology: tpu7x:2x2x1
jax: 0.10.0
libtpu: 0.0.40
codegen_flags: <defaults>
</compile_context>

<pallas_src>
import jax
import jax.numpy as jnp
from jax.experimental import pallas as pl
from jax.experimental.pallas import tpu as pltpu

BN_EPS = 1e-5
LANE = 128
DEFAULT_TILE_M = 512
VMEM_LIMIT_BYTES = 48 * 1024 * 1024  # fits v7x's 64 MiB physical VMEM with headroom


def _round_up(x, m):
    return (x + m - 1) // m * m


def _choose_tile_m(m_real):
    if m_real <= DEFAULT_TILE_M:
        return _round_up(m_real, 8)  # single tile, 8-sublane aligned
    return DEFAULT_TILE_M


# ----------------------------------------------------------------------------
# Pallas kernels
# ----------------------------------------------------------------------------
def _make_conv_kernel(relu):
    """conv (im2col matmul) + bias (+ ReLU), one M tile per grid step."""
    def kernel(p_ref, w_ref, b_ref, o_ref):
        y = jnp.dot(p_ref[...], w_ref[...], preferred_element_type=jnp.float32)
        y = y + b_ref[...]
        if relu:
            y = jnp.maximum(y, 0.0)
        o_ref[...] = y
    return kernel


def _make_conv_stats_kernel(tile_m, m_real):
    """conv + bias, plus per-channel sum / sum-of-squares accumulated across M tiles
    (padded rows masked out) for a second-pass BatchNorm."""
    def kernel(p_ref, w_ref, b_ref, o_ref, sum_ref, ssq_ref):
        i = pl.program_id(0)

        @pl.when(i == 0)
        def _():
            sum_ref[...] = jnp.zeros_like(sum_ref)
            ssq_ref[...] = jnp.zeros_like(ssq_ref)

        y = jnp.dot(p_ref[...], w_ref[...], preferred_element_type=jnp.float32)
        y = y + b_ref[...]
        o_ref[...] = y

        row = i * tile_m + jax.lax.broadcasted_iota(jnp.int32, (tile_m, 1), 0)
        ym = jnp.where(row < m_real, y, 0.0)
        sum_ref[...] += jnp.sum(ym, axis=0, keepdims=True)
        ssq_ref[...] += jnp.sum(ym * ym, axis=0, keepdims=True)
    return kernel


def _bn_relu_kernel(y_ref, sc_ref, sh_ref, o_ref):
    """Apply precomputed BatchNorm scale/shift + ReLU, tiled over M."""
    o_ref[...] = jnp.maximum(y_ref[...] * sc_ref[...] + sh_ref[...], 0.0)


# ----------------------------------------------------------------------------
# im2col (host/XLA side, fused under the surrounding jit)
# ----------------------------------------------------------------------------
# TODO(synk): move patch extraction inside the kernel (halo-slab DMA over NHWC
# input) to avoid the ~4x HBM round-trip of materialized im2col patches.
def _im2col(x_nhwc, kh, kw, stride, pad):
    """Extract conv patches. Returns (M, kh*kw*Cin), kh-major, kw, Cin-minor."""
    n, h, w, c = x_nhwc.shape
    xp = jnp.pad(x_nhwc, ((0, 0), (pad, pad), (pad, pad), (0, 0)))
    oh = (h + 2 * pad - kh) // stride + 1
    ow = (w + 2 * pad - kw) // stride + 1
    cols = []
    for i in range(kh):
        for j in range(kw):
            cols.append(xp[:, i:i + stride * oh:stride, j:j + stride * ow:stride, :])
    patches = jnp.concatenate(cols, axis=-1)            # (N, OH, OW, kh*kw*Cin)
    return patches.reshape(n * oh * ow, kh * kw * c), (n, oh, ow)


# ----------------------------------------------------------------------------
# One conv layer: conv(+bias) [+ BN] [+ ReLU]
# ----------------------------------------------------------------------------
def conv_layer(x_nhwc, weight, bias, gamma, beta, *, stride, pad, bn, relu):
    """weight is PyTorch-layout (Cout, Cin, kh, kw). x is NHWC f32. Returns NHWC f32."""
    cout, cin, kh, kw = weight.shape
    patches, (n, oh, ow) = _im2col(x_nhwc, kh, kw, stride, pad)
    m_real, k = patches.shape

    tile_m = _choose_tile_m(m_real)
    m_pad = _round_up(m_real, tile_m)
    cout_pad = _round_up(cout, LANE)
    n_tiles = m_pad // tile_m

    # bf16 MXU operands; zero-pad M rows (masked out of BN stats) and Cout lanes.
    patches_p = jnp.pad(patches, ((0, m_pad - m_real), (0, 0))).astype(jnp.bfloat16)
    w_mat = jnp.transpose(weight, (2, 3, 1, 0)).reshape(kh * kw * cin, cout)
    w_mat = jnp.pad(w_mat, ((0, 0), (0, cout_pad - cout))).astype(jnp.bfloat16)
    b_row = jnp.pad(bias.astype(jnp.float32), (0, cout_pad - cout)).reshape(1, cout_pad)

    p_spec = pl.BlockSpec((tile_m, k), lambda i: (i, 0))
    w_spec = pl.BlockSpec((k, cout_pad), lambda i: (0, 0))        # resident
    v_spec = pl.BlockSpec((1, cout_pad), lambda i: (0, 0))        # resident vectors
    y_spec = pl.BlockSpec((tile_m, cout_pad), lambda i: (i, 0))

    flops = 2 * m_pad * k * cout_pad
    bytes_in = patches_p.size * 2 + w_mat.size * 2 + b_row.size * 4
    bytes_out = m_pad * cout_pad * 4

    if not bn:
        y = pl.pallas_call(
            _make_conv_kernel(relu),
            out_shape=jax.ShapeDtypeStruct((m_pad, cout_pad), jnp.float32),
            grid_spec=pltpu.PrefetchScalarGridSpec(
                num_scalar_prefetch=0, grid=(n_tiles,),
                in_specs=[p_spec, w_spec, v_spec],
                out_specs=y_spec),
            compiler_params=pltpu.CompilerParams(
                dimension_semantics=("parallel",),
                vmem_limit_bytes=VMEM_LIMIT_BYTES),
            cost_estimate=pl.CostEstimate(
                flops=flops, transcendentals=0,
                bytes_accessed=bytes_in + bytes_out),
        )(patches_p, w_mat, b_row)
    else:
        # Pass 1: conv + bias + per-channel sum / sum-of-squares accumulation.
        y, y_sum, y_ssq = pl.pallas_call(
            _make_conv_stats_kernel(tile_m, m_real),
            out_shape=(jax.ShapeDtypeStruct((m_pad, cout_pad), jnp.float32),
                       jax.ShapeDtypeStruct((1, cout_pad), jnp.float32),
                       jax.ShapeDtypeStruct((1, cout_pad), jnp.float32)),
            grid_spec=pltpu.PrefetchScalarGridSpec(
                num_scalar_prefetch=0, grid=(n_tiles,),
                in_specs=[p_spec, w_spec, v_spec],
                out_specs=(y_spec, v_spec, v_spec)),
            compiler_params=pltpu.CompilerParams(
                dimension_semantics=("arbitrary",),   # stats output is an accumulator
                vmem_limit_bytes=VMEM_LIMIT_BYTES),
            cost_estimate=pl.CostEstimate(
                flops=flops, transcendentals=0,
                bytes_accessed=bytes_in + bytes_out + 2 * cout_pad * 4),
        )(patches_p, w_mat, b_row)

        # Finalize training-mode BatchNorm2d stats (biased variance) in plain JAX:
        # O(Cout) work, fused by XLA.
        mean = y_sum / float(m_real)
        var = jnp.maximum(y_ssq / float(m_real) - mean * mean, 0.0)
        g_row = jnp.pad(gamma.astype(jnp.float32), (0, cout_pad - cout)).reshape(1, cout_pad)
        bt_row = jnp.pad(beta.astype(jnp.float32), (0, cout_pad - cout)).reshape(1, cout_pad)
        scale = g_row * jax.lax.rsqrt(var + BN_EPS)
        shift = bt_row - mean * scale

        # Pass 2: normalize + affine + ReLU, tiled over M.
        y = pl.pallas_call(
            _bn_relu_kernel,
            out_shape=jax.ShapeDtypeStruct((m_pad, cout_pad), jnp.float32),
            grid_spec=pltpu.PrefetchScalarGridSpec(
                num_scalar_prefetch=0, grid=(n_tiles,),
                in_specs=[y_spec, v_spec, v_spec],
                out_specs=y_spec),
            compiler_params=pltpu.CompilerParams(
                dimension_semantics=("parallel",),
                vmem_limit_bytes=VMEM_LIMIT_BYTES),
            cost_estimate=pl.CostEstimate(
                flops=3 * m_pad * cout_pad, transcendentals=0,
                bytes_accessed=2 * m_pad * cout_pad * 4),
        )(y, scale, shift)

    # Drop M padding rows and Cout padding lanes, back to NHWC.
    return y[:m_real, :cout].reshape(n, oh, ow, cout)


# ----------------------------------------------------------------------------
# Parameter construction (deterministic, synthetic)
# ----------------------------------------------------------------------------
def make_wgan_discriminator_params(key, ndf, nc, image_size, n_extra_layers=0):
    cfgs = []    # static layer configuration (closed over at jit time)
    params = []  # jax arrays (jit operands)

    keys = jax.random.split(key, 32)
    ki = [0]

    def add(cout, cin, kh, kw, stride, pad, bn, relu):
        k_w, k_b = jax.random.split(keys[ki[0]])
        ki[0] += 1
        params.append(dict(
            w=jax.random.normal(k_w, (cout, cin, kh, kw), jnp.float32) * 0.05,
            b=jax.random.normal(k_b, (cout,), jnp.float32) * 0.01,
            gamma=jnp.ones((cout,), jnp.float32),
            beta=jnp.zeros((cout,), jnp.float32)))
        cfgs.append(dict(stride=stride, pad=pad, bn=bn, relu=relu))

    # initial conv + ReLU
    add(ndf, nc, 4, 4, 2, 1, False, True)
    csize, cndf = image_size // 2, ndf

    # extra layers (3x3, s1, p1) + BN + ReLU
    for _ in range(n_extra_layers):
        add(cndf, cndf, 3, 3, 1, 1, True, True)

    # pyramid
    while csize > 4:
        add(cndf * 2, cndf, 4, 4, 2, 1, True, True)
        cndf, csize = cndf * 2, csize // 2

    # final conv (cndf -> 1, 4x4, s1, p0), no BN / no ReLU
    add(1, cndf, 4, 4, 1, 0, False, False)
    return tuple(cfgs), params


# ----------------------------------------------------------------------------
# Forward pass
# ----------------------------------------------------------------------------
def build_forward(cfgs):
    def fwd(x_nchw, params):
        # NCHW -> NHWC
        x = jnp.transpose(x_nchw, (0, 2, 3, 1)).astype(jnp.float32)
        for cfg, p in zip(cfgs, params):
            x = conv_layer(x, p["w"], p["b"], p["gamma"], p["beta"],
                           stride=cfg["stride"], pad=cfg["pad"],
                           bn=cfg["bn"], relu=cfg["relu"])
        # final conv must be 1x1x1 spatial so that view(-1,1).squeeze(1) == (N,)
        assert x.shape[1] == 1 and x.shape[2] == 1 and x.shape[3] == 1, x.shape
        return x.reshape(-1)
    return jax.jit(fwd)


if __name__ == "__main__":
    # small shapes consistent with the module: batch=2, nc=3, imageSize=16, ndf=8
    batch, nc, image_size, ndf = 2, 3, 16, 8

    key = jax.random.PRNGKey(0)
    k_x, k_p = jax.random.split(key)
    x = jax.random.normal(k_x, (batch, nc, image_size, image_size), jnp.float32)

    cfgs, params = make_wgan_discriminator_params(k_p, ndf, nc, image_size,
                                                  n_extra_layers=0)
    forward = build_forward(cfgs)

    out = jax.block_until_ready(forward(x, params))
    assert out.shape == (batch,), out.shape
    print("KERNEL_OK")
</pallas_src>

<mosaic_0001>
module attributes {stable_mosaic.version = 11 : i64} {
  func.func @kernel(%arg0: i32, %arg1: memref<128x48xbf16, #tpu.memory_space<vmem>>, %arg2: memref<48x128xbf16, #tpu.memory_space<vmem>>, %arg3: memref<1x128xf32, #tpu.memory_space<vmem>>, %arg4: memref<128x128xf32, #tpu.memory_space<vmem>>) attributes {dimension_semantics = [#tpu.dimension_semantics<parallel>], iteration_bounds = array<i64: 1>, scalar_prefetch = 0 : i64, scratch_operands = 0 : i64, tpu.core_type = #tpu.core_type<tc>, window_params = [{transform_indices = @transform_0, window_bounds = array<i64: 128, 48>}, {pipeline_mode = #tpu.pipeline_mode<synchronous>, transform_indices = @transform_1, window_bounds = array<i64: 48, 128>}, {pipeline_mode = #tpu.pipeline_mode<synchronous>, transform_indices = @transform_2, window_bounds = array<i64: 1, 128>}, {transform_indices = @transform_3, window_bounds = array<i64: 128, 128>}]} {
    %c0 = arith.constant 0 : index
    %c0_0 = arith.constant 0 : index
    %0 = vector.load %arg1[%c0, %c0_0] : memref<128x48xbf16, #tpu.memory_space<vmem>>, vector<128x48xbf16>
    %c0_1 = arith.constant 0 : index
    %c0_2 = arith.constant 0 : index
    %1 = vector.load %arg2[%c0_1, %c0_2] : memref<48x128xbf16, #tpu.memory_space<vmem>>, vector<48x128xbf16>
    %cst = arith.constant dense<0.000000e+00> : vector<128x128xf32>
    %2 = tpu.matmul %0, %1, %cst {dimension_numbers = #tpu.dot_dimension_numbers<[1], [0], [0], [1], [0, 0, 1, 1], [], []>} : vector<128x48xbf16>, vector<48x128xbf16>, vector<128x128xf32> -> vector<128x128xf32>
    %c0_3 = arith.constant 0 : index
    %c0_4 = arith.constant 0 : index
    %3 = vector.load %arg3[%c0_3, %c0_4] : memref<1x128xf32, #tpu.memory_space<vmem>>, vector<1x128xf32>
    %4 = vector.broadcast %3 : vector<1x128xf32> to vector<128x128xf32>
    %5 = arith.addf %2, %4 : vector<128x128xf32>
    %cst_5 = arith.constant 0.000000e+00 : f32
    %6 = vector.broadcast %cst_5 : f32 to vector<128x128xf32>
    %7 = arith.maximumf %5, %6 : vector<128x128xf32>
    %c0_6 = arith.constant 0 : index
    %c0_7 = arith.constant 0 : index
    %8 = vector.load %arg4[%c0_6, %c0_7] : memref<128x128xf32, #tpu.memory_space<vmem>>, vector<128x128xf32>
    tpu.vector_store %arg4[%c0_6, %c0_7], %7 {strides = array<i32>} : memref<128x128xf32, #tpu.memory_space<vmem>>, vector<128x128xf32>,
    return
  }
  func.func @transform_0(%arg0: i32) -> (i32, i32) {
    %c0_i32 = arith.constant 0 : i32
    %c0_i32_0 = arith.constant 0 : i32
    return %arg0, %c0_i32 : i32, i32
  }
  func.func @transform_1(%arg0: i32) -> (i32, i32) {
    %c0_i32 = arith.constant 0 : i32
    %c0_i32_0 = arith.constant 0 : i32
    %c0_i32_1 = arith.constant 0 : i32
    return %c0_i32, %c0_i32_0 : i32, i32
  }
  func.func @transform_2(%arg0: i32) -> (i32, i32) {
    %c0_i32 = arith.constant 0 : i32
    %c0_i32_0 = arith.constant 0 : i32
    %c0_i32_1 = arith.constant 0 : i32
    return %c0_i32, %c0_i32_0 : i32, i32
  }
  func.func @transform_3(%arg0: i32) -> (i32, i32) {
    %c0_i32 = arith.constant 0 : i32
    %c0_i32_0 = arith.constant 0 : i32
    return %arg0, %c0_i32 : i32, i32
  }
}

module attributes {stable_mosaic.version = 11 : i64} {
  func.func @kernel(%arg0: i32, %arg1: memref<32x128xbf16, #tpu.memory_space<vmem>>, %arg2: memref<128x128xbf16, #tpu.memory_space<vmem>>, %arg3: memref<1x128xf32, #tpu.memory_space<vmem>>, %arg4: memref<32x128xf32, #tpu.memory_space<vmem>>, %arg5: memref<1x128xf32, #tpu.memory_space<vmem>>, %arg6: memref<1x128xf32, #tpu.memory_space<vmem>>) attributes {dimension_semantics = [#tpu.dimension_semantics<arbitrary>], iteration_bounds = array<i64: 1>, scalar_prefetch = 0 : i64, scratch_operands = 0 : i64, tpu.core_type = #tpu.core_type<tc>, window_params = [{transform_indices = @transform_0, window_bounds = array<i64: 32, 128>}, {pipeline_mode = #tpu.pipeline_mode<synchronous>, transform_indices = @transform_1, window_bounds = array<i64: 128, 128>}, {pipeline_mode = #tpu.pipeline_mode<synchronous>, transform_indices = @transform_2, window_bounds = array<i64: 1, 128>}, {transform_indices = @transform_3, window_bounds = array<i64: 32, 128>}, {pipeline_mode = #tpu.pipeline_mode<synchronous>, transform_indices = @transform_4, window_bounds = array<i64: 1, 128>}, {pipeline_mode = #tpu.pipeline_mode<synchronous>, transform_indices = @transform_5, window_bounds = array<i64: 1, 128>}]} {
    %c0_i32 = arith.constant 0 : i32
    %0 = arith.cmpi eq, %arg0, %c0_i32 : i32
    %1 = arith.extui %0 : i1 to i32
    %c0_i32_0 = arith.constant 0 : i32
    %2 = arith.cmpi ne, %1, %c0_i32_0 : i32
    scf.if %2 {
      %cst_20 = arith.constant 0.000000e+00 : f32
      %31 = vector.broadcast %cst_20 : f32 to vector<1x128xf32>
      %c0_21 = arith.constant 0 : index
      %c0_22 = arith.constant 0 : index
      %32 = vector.load %arg5[%c0_21, %c0_22] : memref<1x128xf32, #tpu.memory_space<vmem>>, vector<1x128xf32>
      tpu.vector_store %arg5[%c0_21, %c0_22], %31 {strides = array<i32>} : memref<1x128xf32, #tpu.memory_space<vmem>>, vector<1x128xf32>,
      %cst_23 = arith.constant 0.000000e+00 : f32
      %33 = vector.broadcast %cst_23 : f32 to vector<1x128xf32>
      %c0_24 = arith.constant 0 : index
      %c0_25 = arith.constant 0 : index
      %34 = vector.load %arg6[%c0_24, %c0_25] : memref<1x128xf32, #tpu.memory_space<vmem>>, vector<1x128xf32>
      tpu.vector_store %arg6[%c0_24, %c0_25], %33 {strides = array<i32>} : memref<1x128xf32, #tpu.memory_space<vmem>>, vector<1x128xf32>,
    } else {
    }
    %c0 = arith.constant 0 : index
    %c0_1 = arith.constant 0 : index
    %3 = vector.load %arg1[%c0, %c0_1] : memref<32x128xbf16, #tpu.memory_space<vmem>>, vector<32x128xbf16>
    %c0_2 = arith.constant 0 : index
    %c0_3 = arith.constant 0 : index
    %4 = vector.load %arg2[%c0_2, %c0_3] : memref<128x128xbf16, #tpu.memory_space<vmem>>, vector<128x128xbf16>
    %cst = arith.constant dense<0.000000e+00> : vector<32x128xf32>
    %5 = tpu.matmul %3, %4, %cst {dimension_numbers = #tpu.dot_dimension_numbers<[1], [0], [0], [1], [0, 0, 1, 1], [], []>} : vector<32x128xbf16>, vector<128x128xbf16>, vector<32x128xf32> -> vector<32x128xf32>
    %c0_4 = arith.constant 0 : index
    %c0_5 = arith.constant 0 : index
    %6 = vector.load %arg3[%c0_4, %c0_5] : memref<1x128xf32, #tpu.memory_space<vmem>>, vector<1x128xf32>
    %7 = vector.broadcast %6 : vector<1x128xf32> to vector<32x128xf32>
    %8 = arith.addf %5, %7 : vector<32x128xf32>
    %c0_6 = arith.constant 0 : index
    %c0_7 = arith.constant 0 : index
    %9 = vector.load %arg4[%c0_6, %c0_7] : memref<32x128xf32, #tpu.memory_space<vmem>>, vector<32x128xf32>
    tpu.vector_store %arg4[%c0_6, %c0_7], %8 {strides = array<i32>} : memref<32x128xf32, #tpu.memory_space<vmem>>, vector<32x128xf32>,
    %c32_i32 = arith.constant 32 : i32
    %10 = arith.muli %arg0, %c32_i32 : i32
    %11 = tpu.iota {dimensions = array<i32: 0>} : vector<32x1xi32>
    %12 = vector.broadcast %10 : i32 to vector<32x1xi32>
    %13 = arith.addi %12, %11 : vector<32x1xi32>
    %c32_i32_8 = arith.constant 32 : i32
    %14 = vector.broadcast %c32_i32_8 : i32 to vector<32x1xi32>
    %15 = arith.cmpi slt, %13, %14 : vector<32x1xi32>
    %cst_9 = arith.constant 0.000000e+00 : f32
    %16 = vector.shape_cast %15 : vector<32x1xi1> to vector<32x1xi1>
    %17 = vector.broadcast %16 : vector<32x1xi1> to vector<32x128xi1>
    %18 = vector.broadcast %cst_9 : f32 to vector<32x128xf32>
    %19 = arith.select %17, %8, %18 : vector<32x128xi1>, vector<32x128xf32>
    %c0_10 = arith.constant 0 : index
    %c0_11 = arith.constant 0 : index
    %20 = vector.load %arg5[%c0_10, %c0_11] : memref<1x128xf32, #tpu.memory_space<vmem>>, vector<1x128xf32>
    %cst_12 = arith.constant dense<0.000000e+00> : vector<128xf32>
    %21 = vector.multi_reduction <add>, %19, %cst_12 [0] : vector<32x128xf32> to vector<128xf32>
    %22 = vector.shape_cast %21 : vector<128xf32> to vector<1x128xf32>
    %23 = arith.addf %20, %22 : vector<1x128xf32>
    %c0_13 = arith.constant 0 : index
    %c0_14 = arith.constant 0 : index
    %24 = vector.load %arg5[%c0_13, %c0_14] : memref<1x128xf32, #tpu.memory_space<vmem>>, vector<1x128xf32>
    tpu.vector_store %arg5[%c0_13, %c0_14], %23 {strides = array<i32>} : memref<1x128xf32, #tpu.memory_space<vmem>>, vector<1x128xf32>,
    %c0_15 = arith.constant 0 : index
    %c0_16 = arith.constant 0 : index
    %25 = vector.load %arg6[%c0_15, %c0_16] : memref<1x128xf32, #tpu.memory_space<vmem>>, vector<1x128xf32>
    %26 = arith.mulf %19, %19 : vector<32x128xf32>
    %cst_17 = arith.constant dense<0.000000e+00> : vector<128xf32>
    %27 = vector.multi_reduction <add>, %26, %cst_17 [0] : vector<32x128xf32> to vector<128xf32>
    %28 = vector.shape_cast %27 : vector<128xf32> to vector<1x128xf32>
    %29 = arith.addf %25, %28 : vector<1x128xf32>
    %c0_18 = arith.constant 0 : index
    %c0_19 = arith.constant 0 : index
    %30 = vector.load %arg6[%c0_18, %c0_19] : memref<1x128xf32, #tpu.memory_space<vmem>>, vector<1x128xf32>
    tpu.vector_store %arg6[%c0_18, %c0_19], %29 {strides = array<i32>} : memref<1x128xf32, #tpu.memory_space<vmem>>, vector<1x128xf32>,
    return
  }
  func.func @transform_0(%arg0: i32) -> (i32, i32) {
    %c0_i32 = arith.constant 0 : i32
    %c0_i32_0 = arith.constant 0 : i32
    return %arg0, %c0_i32 : i32, i32
  }
  func.func @transform_1(%arg0: i32) -> (i32, i32) {
    %c0_i32 = arith.constant 0 : i32
    %c0_i32_0 = arith.constant 0 : i32
    %c0_i32_1 = arith.constant 0 : i32
    return %c0_i32, %c0_i32_0 : i32, i32
  }
  func.func @transform_2(%arg0: i32) -> (i32, i32) {
    %c0_i32 = arith.constant 0 : i32
    %c0_i32_0 = arith.constant 0 : i32
    %c0_i32_1 = arith.constant 0 : i32
    return %c0_i32, %c0_i32_0 : i32, i32
  }
  func.func @transform_3(%arg0: i32) -> (i32, i32) {
    %c0_i32 = arith.constant 0 : i32
    %c0_i32_0 = arith.constant 0 : i32
    return %arg0, %c0_i32 : i32, i32
  }
  func.func @transform_4(%arg0: i32) -> (i32, i32) {
    %c0_i32 = arith.constant 0 : i32
    %c0_i32_0 = arith.constant 0 : i32
    %c0_i32_1 = arith.constant 0 : i32
    return %c0_i32, %c0_i32_0 : i32, i32
  }
  func.func @transform_5(%arg0: i32) -> (i32, i32) {
    %c0_i32 = arith.constant 0 : i32
    %c0_i32_0 = arith.constant 0 : i32
    %c0_i32_1 = arith.constant 0 : i32
    return %c0_i32, %c0_i32_0 : i32, i32
  }
}

module attributes {stable_mosaic.version = 11 : i64} {
  func.func @_bn_relu_kernel(%arg0: i32, %arg1: memref<32x128xf32, #tpu.memory_space<vmem>>, %arg2: memref<1x128xf32, #tpu.memory_space<vmem>>, %arg3: memref<1x128xf32, #tpu.memory_space<vmem>>, %arg4: memref<32x128xf32, #tpu.memory_space<vmem>>) attributes {dimension_semantics = [#tpu.dimension_semantics<parallel>], iteration_bounds = array<i64: 1>, scalar_prefetch = 0 : i64, scratch_operands = 0 : i64, tpu.core_type = #tpu.core_type<tc>, window_params = [{transform_indices = @transform_0, window_bounds = array<i64: 32, 128>}, {pipeline_mode = #tpu.pipeline_mode<synchronous>, transform_indices = @transform_1, window_bounds = array<i64: 1, 128>}, {pipeline_mode = #tpu.pipeline_mode<synchronous>, transform_indices = @transform_2, window_bounds = array<i64: 1, 128>}, {transform_indices = @transform_3, window_bounds = array<i64: 32, 128>}]} {
    %c0 = arith.constant 0 : index
    %c0_0 = arith.constant 0 : index
    %0 = vector.load %arg1[%c0, %c0_0] : memref<32x128xf32, #tpu.memory_space<vmem>>, vector<32x128xf32>
    %c0_1 = arith.constant 0 : index
    %c0_2 = arith.constant 0 : index
    %1 = vector.load %arg2[%c0_1, %c0_2] : memref<1x128xf32, #tpu.memory_space<vmem>>, vector<1x128xf32>
    %2 = vector.broadcast %1 : vector<1x128xf32> to vector<32x128xf32>
    %3 = arith.mulf %0, %2 : vector<32x128xf32>
    %c0_3 = arith.constant 0 : index
    %c0_4 = arith.constant 0 : index
    %4 = vector.load %arg3[%c0_3, %c0_4] : memref<1x128xf32, #tpu.memory_space<vmem>>, vector<1x128xf32>
    %5 = vector.broadcast %4 : vector<1x128xf32> to vector<32x128xf32>
    %6 = arith.addf %3, %5 : vector<32x128xf32>
    %cst = arith.constant 0.000000e+00 : f32
    %7 = vector.broadcast %cst : f32 to vector<32x128xf32>
    %8 = arith.maximumf %6, %7 : vector<32x128xf32>
    %c0_5 = arith.constant 0 : index
    %c0_6 = arith.constant 0 : index
    %9 = vector.load %arg4[%c0_5, %c0_6] : memref<32x128xf32, #tpu.memory_space<vmem>>, vector<32x128xf32>
    tpu.vector_store %arg4[%c0_5, %c0_6], %8 {strides = array<i32>} : memref<32x128xf32, #tpu.memory_space<vmem>>, vector<32x128xf32>,
    return
  }
  func.func @transform_0(%arg0: i32) -> (i32, i32) {
    %c0_i32 = arith.constant 0 : i32
    %c0_i32_0 = arith.constant 0 : i32
    return %arg0, %c0_i32 : i32, i32
  }
  func.func @transform_1(%arg0: i32) -> (i32, i32) {
    %c0_i32 = arith.constant 0 : i32
    %c0_i32_0 = arith.constant 0 : i32
    %c0_i32_1 = arith.constant 0 : i32
    return %c0_i32, %c0_i32_0 : i32, i32
  }
  func.func @transform_2(%arg0: i32) -> (i32, i32) {
    %c0_i32 = arith.constant 0 : i32
    %c0_i32_0 = arith.constant 0 : i32
    %c0_i32_1 = arith.constant 0 : i32
    return %c0_i32, %c0_i32_0 : i32, i32
  }
  func.func @transform_3(%arg0: i32) -> (i32, i32) {
    %c0_i32 = arith.constant 0 : i32
    %c0_i32_0 = arith.constant 0 : i32
    return %arg0, %c0_i32 : i32, i32
  }
}

module attributes {stable_mosaic.version = 11 : i64} {
  func.func @kernel(%arg0: i32, %arg1: memref<8x256xbf16, #tpu.memory_space<vmem>>, %arg2: memref<256x128xbf16, #tpu.memory_space<vmem>>, %arg3: memref<1x128xf32, #tpu.memory_space<vmem>>, %arg4: memref<8x128xf32, #tpu.memory_space<vmem>>) attributes {dimension_semantics = [#tpu.dimension_semantics<parallel>], iteration_bounds = array<i64: 1>, scalar_prefetch = 0 : i64, scratch_operands = 0 : i64, tpu.core_type = #tpu.core_type<tc>, window_params = [{transform_indices = @transform_0, window_bounds = array<i64: 8, 256>}, {pipeline_mode = #tpu.pipeline_mode<synchronous>, transform_indices = @transform_1, window_bounds = array<i64: 256, 128>}, {pipeline_mode = #tpu.pipeline_mode<synchronous>, transform_indices = @transform_2, window_bounds = array<i64: 1, 128>}, {transform_indices = @transform_3, window_bounds = array<i64: 8, 128>}]} {
    %c0 = arith.constant 0 : index
    %c0_0 = arith.constant 0 : index
    %0 = vector.load %arg1[%c0, %c0_0] : memref<8x256xbf16, #tpu.memory_space<vmem>>, vector<8x256xbf16>
    %c0_1 = arith.constant 0 : index
    %c0_2 = arith.constant 0 : index
    %1 = vector.load %arg2[%c0_1, %c0_2] : memref<256x128xbf16, #tpu.memory_space<vmem>>, vector<256x128xbf16>
    %cst = arith.constant dense<0.000000e+00> : vector<8x128xf32>
    %2 = tpu.matmul %0, %1, %cst {dimension_numbers = #tpu.dot_dimension_numbers<[1], [0], [0], [1], [0, 0, 1, 1], [], []>} : vector<8x256xbf16>, vector<256x128xbf16>, vector<8x128xf32> -> vector<8x128xf32>
    %c0_3 = arith.constant 0 : index
    %c0_4 = arith.constant 0 : index
    %3 = vector.load %arg3[%c0_3, %c0_4] : memref<1x128xf32, #tpu.memory_space<vmem>>, vector<1x128xf32>
    %4 = vector.broadcast %3 : vector<1x128xf32> to vector<8x128xf32>
    %5 = arith.addf %2, %4 : vector<8x128xf32>
    %c0_5 = arith.constant 0 : index
    %c0_6 = arith.constant 0 : index
    %6 = vector.load %arg4[%c0_5, %c0_6] : memref<8x128xf32, #tpu.memory_space<vmem>>, vector<8x128xf32>
    tpu.vector_store %arg4[%c0_5, %c0_6], %5 {strides = array<i32>} : memref<8x128xf32, #tpu.memory_space<vmem>>, vector<8x128xf32>,
    return
  }
  func.func @transform_0(%arg0: i32) -> (i32, i32) {
    %c0_i32 = arith.constant 0 : i32
    %c0_i32_0 = arith.constant 0 : i32
    return %arg0, %c0_i32 : i32, i32
  }
  func.func @transform_1(%arg0: i32) -> (i32, i32) {
    %c0_i32 = arith.constant 0 : i32
    %c0_i32_0 = arith.constant 0 : i32
    %c0_i32_1 = arith.constant 0 : i32
    return %c0_i32, %c0_i32_0 : i32, i32
  }
  func.func @transform_2(%arg0: i32) -> (i32, i32) {
    %c0_i32 = arith.constant 0 : i32
    %c0_i32_0 = arith.constant 0 : i32
    %c0_i32_1 = arith.constant 0 : i32
    return %c0_i32, %c0_i32_0 : i32, i32
  }
  func.func @transform_3(%arg0: i32) -> (i32, i32) {
    %c0_i32 = arith.constant 0 : i32
    %c0_i32_0 = arith.constant 0 : i32
    return %arg0, %c0_i32 : i32, i32
  }
}

</mosaic_0001>

<llo_original>
// kernel: fwd.4
$region0: #{fwd.4}
  #allocation0 [shape = 'u32[]', space=smem, size = 0x4, offset = 0x4, fixed_abs, tag = 'smem constant byte address 0x4 - core index']
  #allocation1 [shape = 'u32[144,128]{1,0:T(1,128)}', space=vmem, size = 0x12000, scoped, tag = 'internal scratch']
  %s0 = inlined_call_operand.vmem [shape: bf16[128,48], index: 0, kind: input, shape index: {}]
  %s1 = inlined_call_operand.vmem [shape: bf16[48,128], index: 1, kind: input, shape index: {}]
  %s2 = inlined_call_operand.vmem [shape: f32[1,128], index: 2, kind: input, shape index: {}]
  %s3 = inlined_call_operand.vmem [shape: f32[128,128], index: 3, kind: output, shape index: {}]
  %s4 = sld [smem:[#allocation0]]
  $region22: #{fwd.4} parent=0
    _
  %s6 = ssub.s32 1, %s4
  %s7 = scalar_select 0, %s6, %s4
  // Predicated region
  $region2: #{fwd.4} parent=0 // pred_check
    _
  $region3: #{fwd.4} parent=0 // pred_check_branch
    %9 = sbr.rel (0) target = $region5
  $region4: #{fwd.4} parent=0 // pred_region
    _
  $region5: #{fwd.4} parent=0 // pred_fallthru
    _
  // Predicated region
  $region6: #{fwd.4} parent=0 // pred_check
    _
  $region7: #{fwd.4} parent=0 // pred_check_branch
    %11 = sbr.rel (0) target = $region9
  $region8: #{fwd.4} parent=0 // pred_region
    _
  $region9: #{fwd.4} parent=0 // pred_fallthru
    _
  // Predicated region
  $region10: #{fwd.4} parent=0 // pred_check
    _
  $region11: #{fwd.4} parent=0 // pred_check_branch
    %13 = sbr.rel (0) target = $region13
  $region12: #{fwd.4} parent=0 // pred_region
    _
  $region13: #{fwd.4} parent=0 // pred_fallthru
    _
  %v15 = vld [vmem:[%s0] sm:$0xf]
  %v16 = vld [vmem:[%s0 + $0x4] sm:$0xf]
  %v17 = vld [vmem:[%s0 + $0x8] sm:$0xf]
  %v18 = vld [vmem:[%s0 + $0xc] sm:$0xf]
  %v19 = vld [vmem:[%s0 + $0x10] sm:$0xf]
  %v20 = vld [vmem:[%s0 + $0x14] sm:$0xf]
  %v21 = vld [vmem:[%s0 + $0x18] sm:$0xf]
  %v22 = vld [vmem:[%s0 + $0x1c] sm:$0xf]
  %v23 = vld [vmem:[%s0 + $0x20] sm:$0xf]
  %v24 = vld [vmem:[%s0 + $0x24] sm:$0xf]
  %v25 = vld [vmem:[%s0 + $0x28] sm:$0xf]
  %v26 = vld [vmem:[%s0 + $0x2c] sm:$0xf]
  %v27 = vld [vmem:[%s0 + $0x30] sm:$0xf]
  %v28 = vld [vmem:[%s0 + $0x34] sm:$0xf]
  %v29 = vld [vmem:[%s0 + $0x38] sm:$0xf]
  %v30 = vld [vmem:[%s0 + $0x3c] sm:$0xf]
  %v31 = vld [vmem:[%s1] sm:$0xf]
  %v32 = vld [vmem:[%s1 + $0x4] sm:$0xf]
  %v33 = vld [vmem:[%s1 + $0x8] sm:$0xf]
  %v34 = vld [vmem:[%s1 + $0xc] sm:$0xf]
  %v35 = vld [vmem:[%s1 + $0x10] sm:$0xf]
  %v36 = vld [vmem:[%s1 + $0x14] sm:$0xf]
  %v37 = vld [vmem:[%s2] sm:$0x1]
  %v39 = vlaneseq
  %v40 = vshrl.u32 %v39, 7
  %v41 = vsub.s32 0, %v40
  %v42 = vrot.slane %v37, %v41
  %v60 = vunpack.c.l.b16 %v15
  %v61 = vunpack.c.l.b16 %v16
  %v62 = vunpack.c.l.b16 %v17
  %v63 = vunpack.c.l.b16 %v18
  %v64 = vunpack.c.l.b16 %v19
  %v65 = vunpack.c.l.b16 %v20
  %v66 = vunpack.c.l.b16 %v21
  %v67 = vunpack.c.l.b16 %v22
  %v68 = vunpack.c.l.b16 %v23
  %v69 = vunpack.c.l.b16 %v24
  %v70 = vunpack.c.l.b16 %v25
  %v71 = vunpack.c.l.b16 %v26
  %v72 = vunpack.c.l.b16 %v27
  %v73 = vunpack.c.l.b16 %v28
  %v74 = vunpack.c.l.b16 %v29
  %v75 = vunpack.c.l.b16 %v30
  %v76 = vpack.c.b16 %v61, %v60
  %v77 = vpack.c.b16 %v63, %v62
  %v78 = vpack.c.b16 %v65, %v64
  %v79 = vpack.c.b16 %v67, %v66
  %v80 = vpack.c.b16 %v69, %v68
  %v81 = vpack.c.b16 %v71, %v70
  %v82 = vpack.c.b16 %v73, %v72
  %v83 = vpack.c.b16 %v75, %v74
  %v90 = vunpack.c.l.b16 %v31
  %v91 = vunpack.c.l.b16 %v32
  %v92 = vunpack.c.l.b16 %v33
  %v93 = vunpack.c.l.b16 %v34
  %v94 = vunpack.c.l.b16 %v35
  %v95 = vunpack.c.l.b16 %v36
  %v96 = vpack.c.b16 %v91, %v90
  %v97 = vpack.c.b16 %v93, %v92
  %v98 = vpack.c.b16 %v95, %v94
  %vm102 = vcmask 392192
  %v104 = vsel %vm102, %v76, 0
  %v107 = vsel %vm102, %v77, 0
  %v110 = vsel %vm102, %v78, 0
  %v113 = vsel %vm102, %v79, 0
  %v116 = vsel %vm102, %v80, 0
  %v119 = vsel %vm102, %v81, 0
  %v122 = vsel %vm102, %v82, 0
  %v125 = vsel %vm102, %v83, 0
  %127 = vmatprep.subr.bf16.mxu0 0
  %128 = vmatpush1.bf16.msra.mxu0 %v96
  %129 = vmatprep.subr.bf16.mxu0 0
  %130 = vmatpush1.bf16.msra.mxu0 %v97
  %131 = vmatprep.subr.bf16.mxu0 0
  %132 = vmatpush1.bf16.msra.mxu0 %v98
  %133 = vmatprep.subr.bf16.mxu0 0
  %134 = vmatpush1.bf16.msra.mxu0 0
  %135 = vmatprep.subr.bf16.mxu0 0
  %136 = vmatpush1.bf16.msra.mxu0 0
  %137 = vmatprep.subr.bf16.mxu0 0
  %138 = vmatpush1.bf16.msra.mxu0 0
  %139 = vmatprep.subr.bf16.mxu0 0
  %140 = vmatpush1.bf16.msra.mxu0 0
  %141 = vmatprep.subr.bf16.mxu0 0
  %142 = vmatpush1.bf16.msra.mxu0 0
  %143 = vmatprep.subr.bf16.mxu0 0
  %144 = vmatpush1.bf16.msra.mxu0 0
  %145 = vmatprep.subr.bf16.mxu0 0
  %146 = vmatpush1.bf16.msra.mxu0 0
  %147 = vmatprep.subr.bf16.mxu0 0
  %148 = vmatpush1.bf16.msra.mxu0 0
  %149 = vmatprep.subr.bf16.mxu0 0
  %150 = vmatpush1.bf16.msra.mxu0 0
  %151 = vmatprep.subr.bf16.mxu0 0
  %152 = vmatpush1.bf16.msra.mxu0 0
  %153 = vmatprep.subr.bf16.mxu0 0
  %154 = vmatpush1.bf16.msra.mxu0 0
  %155 = vmatprep.subr.bf16.mxu0 0
  %156 = vmatpush1.bf16.msra.mxu0 0
  %157 = vmatprep.subr.bf16.mxu0 0
  %158 = vmatpush1.bf16.msra.mxu0 0
  %159 = vmatprep.mubr.bf16.mxu0 0
  %160 = vmatmul.mubr.bf16.gmra.mrb[0].mxu0 %v104
  %v161 = vpop.f32.mrb[0].mxu0
  %v162 = vadd.f32 %v42, %v161
  %v163 = vpop.f32.mrb[0].mxu0
  %v164 = vpop.f32.mrb[0].mxu0
  %v165 = vadd.f32 %v42, %v164
  %v166 = vpop.f32.mrb[0].mxu0
  %167 = vmatprep.mubr.bf16.mxu0 0
  %168 = vmatmul.mubr.bf16.gmra.mrb[0].mxu0 %v107
  %v169 = vpop.f32.mrb[0].mxu0
  %v170 = vadd.f32 %v42, %v169
  %v171 = vpop.f32.mrb[0].mxu0
  %v172 = vpop.f32.mrb[0].mxu0
  %v173 = vadd.f32 %v42, %v172
  %v174 = vpop.f32.mrb[0].mxu0
  %175 = vmatprep.mubr.bf16.mxu0 0
  %176 = vmatmul.mubr.bf16.gmra.mrb[0].mxu0 %v110
  %v177 = vpop.f32.mrb[0].mxu0
  %v178 = vadd.f32 %v42, %v177
  %v179 = vpop.f32.mrb[0].mxu0
  %v180 = vpop.f32.mrb[0].mxu0
  %v181 = vadd.f32 %v42, %v180
  %v182 = vpop.f32.mrb[0].mxu0
  %183 = vmatprep.mubr.bf16.mxu0 0
  %184 = vmatmul.mubr.bf16.gmra.mrb[0].mxu0 %v113
  %v185 = vpop.f32.mrb[0].mxu0
  %v186 = vadd.f32 %v42, %v185
  %v187 = vpop.f32.mrb[0].mxu0
  %v188 = vpop.f32.mrb[0].mxu0
  %v189 = vadd.f32 %v42, %v188
  %v190 = vpop.f32.mrb[0].mxu0
  %191 = vmatprep.mubr.bf16.mxu0 0
  %192 = vmatmul.mubr.bf16.gmra.mrb[0].mxu0 %v116
  %v193 = vpop.f32.mrb[0].mxu0
  %v194 = vadd.f32 %v42, %v193
  %v195 = vpop.f32.mrb[0].mxu0
  %v196 = vpop.f32.mrb[0].mxu0
  %v197 = vadd.f32 %v42, %v196
  %v198 = vpop.f32.mrb[0].mxu0
  %199 = vmatprep.mubr.bf16.mxu0 0
  %200 = vmatmul.mubr.bf16.gmra.mrb[0].mxu0 %v119
  %v201 = vpop.f32.mrb[0].mxu0
  %v202 = vadd.f32 %v42, %v201
  %v203 = vpop.f32.mrb[0].mxu0
  %v204 = vpop.f32.mrb[0].mxu0
  %v205 = vadd.f32 %v42, %v204
  %v206 = vpop.f32.mrb[0].mxu0
  %207 = vmatprep.mubr.bf16.mxu0 0
  %208 = vmatmul.mubr.bf16.gmra.mrb[0].mxu0 %v122
  %v209 = vpop.f32.mrb[0].mxu0
  %v210 = vadd.f32 %v42, %v209
  %v211 = vpop.f32.mrb[0].mxu0
  %v212 = vpop.f32.mrb[0].mxu0
  %v213 = vadd.f32 %v42, %v212
  %v214 = vpop.f32.mrb[0].mxu0
  %215 = vmatprep.mubr.bf16.mxu0 0
  %216 = vmatmul.mubr.bf16.gmra.mrb[0].mxu0 %v125
  %v217 = vpop.f32.mrb[0].mxu0
  %v218 = vadd.f32 %v42, %v217
  %v219 = vpop.f32.mrb[0].mxu0
  %v220 = vpop.f32.mrb[0].mxu0
  %v221 = vadd.f32 %v42, %v220
  %v222 = vpop.f32.mrb[0].mxu0
  %223 = vdwg.mxu0
  %v224 = vmax.f32 %v162, 0.0
  %v225 = vmax.f32 %v165, 0.0
  %v226 = vmax.f32 %v170, 0.0
  %v227 = vmax.f32 %v173, 0.0
  %v228 = vmax.f32 %v178, 0.0
  %v229 = vmax.f32 %v181, 0.0
  %v230 = vmax.f32 %v186, 0.0
  %v231 = vmax.f32 %v189, 0.0
  %v232 = vmax.f32 %v194, 0.0
  %v233 = vmax.f32 %v197, 0.0
  %v234 = vmax.f32 %v202, 0.0
  %v235 = vmax.f32 %v205, 0.0
  %v236 = vmax.f32 %v210, 0.0
  %v237 = vmax.f32 %v213, 0.0
  %v238 = vmax.f32 %v218, 0.0
  %v239 = vmax.f32 %v221, 0.0
  %240 = vst [vmem:[%s3] sm:$0xff] %v224
  %241 = vst [vmem:[%s3 + $0x8] sm:$0xff] %v225
  %242 = vst [vmem:[%s3 + $0x10] sm:$0xff] %v226
  %243 = vst [vmem:[%s3 + $0x18] sm:$0xff] %v227
  %244 = vst [vmem:[%s3 + $0x20] sm:$0xff] %v228
  %245 = vst [vmem:[%s3 + $0x28] sm:$0xff] %v229
  %246 = vst [vmem:[%s3 + $0x30] sm:$0xff] %v230
  %247 = vst [vmem:[%s3 + $0x38] sm:$0xff] %v231
  %248 = vst [vmem:[%s3 + $0x40] sm:$0xff] %v232
  %249 = vst [vmem:[%s3 + $0x48] sm:$0xff] %v233
  %250 = vst [vmem:[%s3 + $0x50] sm:$0xff] %v234
  %251 = vst [vmem:[%s3 + $0x58] sm:$0xff] %v235
  %252 = vst [vmem:[%s3 + $0x60] sm:$0xff] %v236
  %253 = vst [vmem:[%s3 + $0x68] sm:$0xff] %v237
  %254 = vst [vmem:[%s3 + $0x70] sm:$0xff] %v238
  %255 = vst [vmem:[%s3 + $0x78] sm:$0xff] %v239
  // Predicated region
  $region14: #{fwd.4} parent=0 // pred_check
    _
  $region15: #{fwd.4} parent=0 // pred_check_branch
    %257 = sbr.rel (0) target = $region17
  $region16: #{fwd.4} parent=0 // pred_region
    _
  $region17: #{fwd.4} parent=0 // pred_fallthru
    _
  // Predicated region
  $region18: #{fwd.4} parent=0 // pred_check
    _
  $region19: #{fwd.4} parent=0 // pred_check_branch
    %259 = sbr.rel (0) target = $region21
  $region20: #{fwd.4} parent=0 // pred_region
    _
  $region21: #{fwd.4} parent=0 // pred_fallthru
    _

// kernel: fwd.5
$region0: #{fwd.5}
  #allocation0 [shape = 'u32[]', space=smem, size = 0x4, offset = 0x4, fixed_abs, tag = 'smem constant byte address 0x4 - core index']
  #allocation1 [shape = 'u32[144,128]{1,0:T(1,128)}', space=vmem, size = 0x12000, scoped, tag = 'internal scratch']
  %s0 = inlined_call_operand.vmem [shape: bf16[32,128], index: 0, kind: input, shape index: {}]
  %s1 = inlined_call_operand.vmem [shape: bf16[128,128], index: 1, kind: input, shape index: {}]
  %s2 = inlined_call_operand.vmem [shape: f32[1,128], index: 2, kind: input, shape index: {}]
  %s3 = inlined_call_operand.vmem [shape: f32[32,128], index: 3, kind: output, shape index: {0}]
  %s4 = inlined_call_operand.vmem [shape: f32[1,128], index: 4, kind: output, shape index: {1}]
  %s5 = inlined_call_operand.vmem [shape: f32[1,128], index: 5, kind: output, shape index: {2}]
  %6 = xla_tuple %s3, %s4, %s5
  %s7 = sld [smem:[#allocation0]]
  $region42: #{fwd.5} parent=0
    _
  %s9 = ssub.s32 1, %s7
  %s10 = scalar_select 0, %s9, %s7
  // Predicated region
  $region2: #{fwd.5} parent=0 // pred_check
    _
  $region3: #{fwd.5} parent=0 // pred_check_branch
    %12 = sbr.rel (0) target = $region5
  $region4: #{fwd.5} parent=0 // pred_region
    _
  $region5: #{fwd.5} parent=0 // pred_fallthru
    _
  // Predicated region
  $region6: #{fwd.5} parent=0 // pred_check
    _
  $region7: #{fwd.5} parent=0 // pred_check_branch
    %14 = sbr.rel (0) target = $region9
  $region8: #{fwd.5} parent=0 // pred_region
    _
  $region9: #{fwd.5} parent=0 // pred_fallthru
    _
  // Predicated region
  $region10: #{fwd.5} parent=0 // pred_check
    _
  $region11: #{fwd.5} parent=0 // pred_check_branch
    %16 = sbr.rel (0) target = $region13
  $region12: #{fwd.5} parent=0 // pred_region
    _
  $region13: #{fwd.5} parent=0 // pred_fallthru
    _
  %p18 = scmp.eq.s32.totalorder 0, 0
  // Predicated region
  $region14: #{fwd.5} parent=0 // pred_check
    %p19 = pneg %p18
  $region15: #{fwd.5} parent=0 // pred_check_branch
    %21 = sbr.rel (%p19) target = $region17
  $region16: #{fwd.5} parent=0 // pred_region
    %22 = vst [vmem:[%s4] sm:$0x1] 0.0
    %23 = vst [vmem:[%s5] sm:$0x1] 0.0
  $region17: #{fwd.5} parent=0 // pred_fallthru
    _
  %v24 = vld [vmem:[%s0] sm:$0xf]
  %v25 = vld [vmem:[%s0 + $0x4] sm:$0xf]
  %v26 = vld [vmem:[%s0 + $0x8] sm:$0xf]
  %v27 = vld [vmem:[%s0 + $0xc] sm:$0xf]
  %v28 = vld [vmem:[%s1] sm:$0xf]
  %v29 = vld [vmem:[%s1 + $0x4] sm:$0xf]
  %v30 = vld [vmem:[%s1 + $0x8] sm:$0xf]
  %v31 = vld [vmem:[%s1 + $0xc] sm:$0xf]
  %v32 = vld [vmem:[%s1 + $0x10] sm:$0xf]
  %v33 = vld [vmem:[%s1 + $0x14] sm:$0xf]
  %v34 = vld [vmem:[%s1 + $0x18] sm:$0xf]
  %v35 = vld [vmem:[%s1 + $0x1c] sm:$0xf]
  %v36 = vld [vmem:[%s1 + $0x20] sm:$0xf]
  %v37 = vld [vmem:[%s1 + $0x24] sm:$0xf]
  %v38 = vld [vmem:[%s1 + $0x28] sm:$0xf]
  %v39 = vld [vmem:[%s1 + $0x2c] sm:$0xf]
  %v40 = vld [vmem:[%s1 + $0x30] sm:$0xf]
  %v41 = vld [vmem:[%s1 + $0x34] sm:$0xf]
  %v42 = vld [vmem:[%s1 + $0x38] sm:$0xf]
  %v43 = vld [vmem:[%s1 + $0x3c] sm:$0xf]
  %v44 = vld [vmem:[%s2] sm:$0x1]
  %v46 = vlaneseq
  %v47 = vshrl.u32 %v46, 7
  %v48 = vsub.s32 0, %v47
  %v49 = vrot.slane %v44, %v48
  %v55 = vunpack.c.l.b16 %v24
  %v56 = vunpack.c.l.b16 %v25
  %v57 = vunpack.c.l.b16 %v26
  %v58 = vunpack.c.l.b16 %v27
  %v59 = vpack.c.b16 %v56, %v55
  %v60 = vpack.c.b16 %v58, %v57
  %v79 = vunpack.c.l.b16 %v28
  %v80 = vunpack.c.l.b16 %v29
  %v81 = vunpack.c.l.b16 %v30
  %v82 = vunpack.c.l.b16 %v31
  %v83 = vunpack.c.l.b16 %v32
  %v84 = vunpack.c.l.b16 %v33
  %v85 = vunpack.c.l.b16 %v34
  %v86 = vunpack.c.l.b16 %v35
  %v87 = vunpack.c.l.b16 %v36
  %v88 = vunpack.c.l.b16 %v37
  %v89 = vunpack.c.l.b16 %v38
  %v90 = vunpack.c.l.b16 %v39
  %v91 = vunpack.c.l.b16 %v40
  %v92 = vunpack.c.l.b16 %v41
  %v93 = vunpack.c.l.b16 %v42
  %v94 = vunpack.c.l.b16 %v43
  %v95 = vpack.c.b16 %v80, %v79
  %v96 = vpack.c.b16 %v82, %v81
  %v97 = vpack.c.b16 %v84, %v83
  %v98 = vpack.c.b16 %v86, %v85
  %v99 = vpack.c.b16 %v88, %v87
  %v100 = vpack.c.b16 %v90, %v89
  %v101 = vpack.c.b16 %v92, %v91
  %v102 = vpack.c.b16 %v94, %v93
  %111 = vmatprep.subr.bf16.mxu0 0
  %112 = vmatpush1.bf16.msra.mxu0 %v95
  %113 = vmatprep.subr.bf16.mxu0 0
  %114 = vmatpush1.bf16.msra.mxu0 %v96
  %115 = vmatprep.subr.bf16.mxu0 0
  %116 = vmatpush1.bf16.msra.mxu0 %v97
  %117 = vmatprep.subr.bf16.mxu0 0
  %118 = vmatpush1.bf16.msra.mxu0 %v98
  %119 = vmatprep.subr.bf16.mxu0 0
  %120 = vmatpush1.bf16.msra.mxu0 %v99
  %121 = vmatprep.subr.bf16.mxu0 0
  %122 = vmatpush1.bf16.msra.mxu0 %v100
  %123 = vmatprep.subr.bf16.mxu0 0
  %124 = vmatpush1.bf16.msra.mxu0 %v101
  %125 = vmatprep.subr.bf16.mxu0 0
  %126 = vmatpush1.bf16.msra.mxu0 %v102
  %127 = vmatprep.subr.bf16.mxu0 0
  %128 = vmatpush1.bf16.msra.mxu0 0
  %129 = vmatprep.subr.bf16.mxu0 0
  %130 = vmatpush1.bf16.msra.mxu0 0
  %131 = vmatprep.subr.bf16.mxu0 0
  %132 = vmatpush1.bf16.msra.mxu0 0
  %133 = vmatprep.subr.bf16.mxu0 0
  %134 = vmatpush1.bf16.msra.mxu0 0
  %135 = vmatprep.subr.bf16.mxu0 0
  %136 = vmatpush1.bf16.msra.mxu0 0
  %137 = vmatprep.subr.bf16.mxu0 0
  %138 = vmatpush1.bf16.msra.mxu0 0
  %139 = vmatprep.subr.bf16.mxu0 0
  %140 = vmatpush1.bf16.msra.mxu0 0
  %141 = vmatprep.subr.bf16.mxu0 0
  %142 = vmatpush1.bf16.msra.mxu0 0
  %143 = vmatprep.mubr.bf16.mxu0 0
  %144 = vmatmul.mubr.bf16.gmra.mrb[0].mxu0 %v59
  %v145 = vpop.f32.mrb[0].mxu0
  %v146 = vadd.f32 %v49, %v145
  %v147 = vpop.f32.mrb[0].mxu0
  %v148 = vpop.f32.mrb[0].mxu0
  %v149 = vadd.f32 %v49, %v148
  %v150 = vpop.f32.mrb[0].mxu0
  %151 = vmatprep.mubr.bf16.mxu0 0
  %152 = vmatmul.mubr.bf16.gmra.mrb[0].mxu0 %v60
  %v153 = vpop.f32.mrb[0].mxu0
  %v154 = vadd.f32 %v49, %v153
  %v155 = vpop.f32.mrb[0].mxu0
  %v156 = vpop.f32.mrb[0].mxu0
  %v157 = vadd.f32 %v49, %v156
  %v158 = vpop.f32.mrb[0].mxu0
  %159 = vdwg.mxu0
  %160 = vst [vmem:[%s3] sm:$0xff] %v146
  %161 = vst [vmem:[%s3 + $0x8] sm:$0xff] %v149
  %162 = vst [vmem:[%s3 + $0x10] sm:$0xff] %v154
  %163 = vst [vmem:[%s3 + $0x18] sm:$0xff] %v157
  %s164 = smul.u32 0, 32
  %v165 = vlaneseq
  %v166 = vshrl.u32 %v165, 7
  %v167 = vadd.s32 %v166, 8
  %v168 = vadd.s32 %v166, 16
  %v169 = vadd.s32 %v166, 24
  %v170 = vstv %s164
  %v171 = vadd.s32 %v170, %v166
  %v172 = vadd.s32 %v170, %v167
  %v173 = vadd.s32 %v170, %v168
  %v174 = vadd.s32 %v170, %v169
  %vm175 = vcmp.lt.s32.totalorder %v171, 32
  %vm176 = vcmp.lt.s32.totalorder %v172, 32
  %vm177 = vcmp.lt.s32.totalorder %v173, 32
  %vm178 = vcmp.lt.s32.totalorder %v174, 32
  %v179 = vsel %vm175, 1, 0
  %v180 = vsel %vm176, 1, 0
  %v181 = vsel %vm177, 1, 0
  %v182 = vsel %vm178, 1, 0
  %vm183 = vcmp.eq.s32.totalorder %v179, 1
  %vm184 = vcmp.eq.s32.totalorder %v180, 1
  %vm185 = vcmp.eq.s32.totalorder %v181, 1
  %vm186 = vcmp.eq.s32.totalorder %v182, 1
  %v187 = vsel %vm183, %v146, 0.0
  %v188 = vsel %vm184, %v149, 0.0
  %v189 = vsel %vm185, %v154, 0.0
  %v190 = vsel %vm186, %v157, 0.0
  %v191 = vld [vmem:[%s4] sm:$0x1]
  %v192 = vadd.f32 %v187, %v188
  %v193 = vadd.f32 %v192, %v189
  %v194 = vadd.f32 %v193, %v190
  %v195 = vrot.slane %v194, 4
  %v196 = vadd.f32 %v194, %v195
  %v197 = vrot.slane %v196, 2
  %v198 = vadd.f32 %v196, %v197
  %v199 = vrot.slane %v198, 1
  %v200 = vadd.f32 %v198, %v199
  %v201 = vadd.f32 %v191, %v200
  %202 = vst [vmem:[%s4] sm:$0x1] %v201
  %v203 = vld [vmem:[%s5] sm:$0x1]
  %v204 = vmul.f32 %v187, %v187
  %v205 = vmul.f32 %v188, %v188
  %v206 = vmul.f32 %v189, %v189
  %v207 = vmul.f32 %v190, %v190
  %v208 = vadd.f32 %v204, %v205
  %v209 = vadd.f32 %v208, %v206
  %v210 = vadd.f32 %v209, %v207
  %v211 = vrot.slane %v210, 4
  %v212 = vadd.f32 %v210, %v211
  %v213 = vrot.slane %v212, 2
  %v214 = vadd.f32 %v212, %v213
  %v215 = vrot.slane %v214, 1
  %v216 = vadd.f32 %v214, %v215
  %v217 = vadd.f32 %v203, %v216
  %218 = vst [vmem:[%s5] sm:$0x1] %v217
  // Predicated region
  $region18: #{fwd.5} parent=0 // pred_check
    _
  $region19: #{fwd.5} parent=0 // pred_check_branch
    %220 = sbr.rel (0) target = $region21
  $region20: #{fwd.5} parent=0 // pred_region
    _
  $region21: #{fwd.5} parent=0 // pred_fallthru
    _
  // Predicated region
  $region22: #{fwd.5} parent=0 // pred_check
    _
  $region23: #{fwd.5} parent=0 // pred_check_branch
    %222 = sbr.rel (0) target = $region25
  $region24: #{fwd.5} parent=0 // pred_region
    _
  $region25: #{fwd.5} parent=0 // pred_fallthru
    _
  // Predicated region
  $region26: #{fwd.5} parent=0 // pred_check
    _
  $region27: #{fwd.5} parent=0 // pred_check_branch
    %224 = sbr.rel (0) target = $region29
  $region28: #{fwd.5} parent=0 // pred_region
    _
  $region29: #{fwd.5} parent=0 // pred_fallthru
    _
  // Predicated region
  $region30: #{fwd.5} parent=0 // pred_check
    _
  $region31: #{fwd.5} parent=0 // pred_check_branch
    %226 = sbr.rel (0) target = $region33
  $region32: #{fwd.5} parent=0 // pred_region
    _
  $region33: #{fwd.5} parent=0 // pred_fallthru
    _
  // Predicated region
  $region34: #{fwd.5} parent=0 // pred_check
    _
  $region35: #{fwd.5} parent=0 // pred_check_branch
    %228 = sbr.rel (0) target = $region37
  $region36: #{fwd.5} parent=0 // pred_region
    _
  $region37: #{fwd.5} parent=0 // pred_fallthru
    _
  // Predicated region
  $region38: #{fwd.5} parent=0 // pred_check
    _
  $region39: #{fwd.5} parent=0 // pred_check_branch
    %230 = sbr.rel (0) target = $region41
  $region40: #{fwd.5} parent=0 // pred_region
    _
  $region41: #{fwd.5} parent=0 // pred_fallthru
    _

// kernel: fwd.6
$region0: #{fwd.6}
  #allocation0 [shape = 'u32[]', space=smem, size = 0x4, offset = 0x4, fixed_abs, tag = 'smem constant byte address 0x4 - core index']
  #allocation1 [shape = 'u32[144,128]{1,0:T(1,128)}', space=vmem, size = 0x12000, scoped, tag = 'internal scratch']
  %s0 = inlined_call_operand.vmem [shape: f32[32,128], index: 0, kind: input, shape index: {}]
  %s1 = inlined_call_operand.vmem [shape: f32[1,128], index: 1, kind: input, shape index: {}]
  %s2 = inlined_call_operand.vmem [shape: f32[1,128], index: 2, kind: input, shape index: {}]
  %s3 = inlined_call_operand.vmem [shape: f32[32,128], index: 3, kind: output, shape index: {}]
  %s4 = sld [smem:[#allocation0]]
  $region22: #{fwd.6} parent=0
    _
  %s6 = ssub.s32 1, %s4
  %s7 = scalar_select 0, %s6, %s4
  // Predicated region
  $region2: #{fwd.6} parent=0 // pred_check
    _
  $region3: #{fwd.6} parent=0 // pred_check_branch
    %9 = sbr.rel (0) target = $region5
  $region4: #{fwd.6} parent=0 // pred_region
    _
  $region5: #{fwd.6} parent=0 // pred_fallthru
    _
  // Predicated region
  $region6: #{fwd.6} parent=0 // pred_check
    _
  $region7: #{fwd.6} parent=0 // pred_check_branch
    %11 = sbr.rel (0) target = $region9
  $region8: #{fwd.6} parent=0 // pred_region
    _
  $region9: #{fwd.6} parent=0 // pred_fallthru
    _
  // Predicated region
  $region10: #{fwd.6} parent=0 // pred_check
    _
  $region11: #{fwd.6} parent=0 // pred_check_branch
    %13 = sbr.rel (0) target = $region13
  $region12: #{fwd.6} parent=0 // pred_region
    _
  $region13: #{fwd.6} parent=0 // pred_fallthru
    _
  %v14 = vld [vmem:[%s0] sm:$0xff]
  %v15 = vld [vmem:[%s0 + $0x8] sm:$0xff]
  %v16 = vld [vmem:[%s0 + $0x10] sm:$0xff]
  %v17 = vld [vmem:[%s0 + $0x18] sm:$0xff]
  %v18 = vld [vmem:[%s1] sm:$0x1]
  %v20 = vlaneseq
  %v21 = vshrl.u32 %v20, 7
  %v22 = vsub.s32 0, %v21
  %v23 = vrot.slane %v18, %v22
  %v25 = vmul.f32 %v14, %v23
  %v26 = vmul.f32 %v15, %v23
  %v27 = vmul.f32 %v16, %v23
  %v28 = vmul.f32 %v17, %v23
  %v29 = vld [vmem:[%s2] sm:$0x1]
  %v31 = vlaneseq
  %v32 = vshrl.u32 %v31, 7
  %v33 = vsub.s32 0, %v32
  %v34 = vrot.slane %v29, %v33
  %v36 = vadd.f32 %v25, %v34
  %v37 = vadd.f32 %v26, %v34
  %v38 = vadd.f32 %v27, %v34
  %v39 = vadd.f32 %v28, %v34
  %v40 = vmax.f32 %v36, 0.0
  %v41 = vmax.f32 %v37, 0.0
  %v42 = vmax.f32 %v38, 0.0
  %v43 = vmax.f32 %v39, 0.0
  %44 = vst [vmem:[%s3] sm:$0xff] %v40
  %45 = vst [vmem:[%s3 + $0x8] sm:$0xff] %v41
  %46 = vst [vmem:[%s3 + $0x10] sm:$0xff] %v42
  %47 = vst [vmem:[%s3 + $0x18] sm:$0xff] %v43
  // Predicated region
  $region14: #{fwd.6} parent=0 // pred_check
    _
  $region15: #{fwd.6} parent=0 // pred_check_branch
    %49 = sbr.rel (0) target = $region17
  $region16: #{fwd.6} parent=0 // pred_region
    _
  $region17: #{fwd.6} parent=0 // pred_fallthru
    _
  // Predicated region
  $region18: #{fwd.6} parent=0 // pred_check
    _
  $region19: #{fwd.6} parent=0 // pred_check_branch
    %51 = sbr.rel (0) target = $region21
  $region20: #{fwd.6} parent=0 // pred_region
    _
  $region21: #{fwd.6} parent=0 // pred_fallthru
    _

// kernel: fwd.7
$region0: #{fwd.7}
  #allocation0 [shape = 'u32[]', space=smem, size = 0x4, offset = 0x4, fixed_abs, tag = 'smem constant byte address 0x4 - core index']
  #allocation1 [shape = 'u32[144,128]{1,0:T(1,128)}', space=vmem, size = 0x12000, scoped, tag = 'internal scratch']
  %s0 = inlined_call_operand.vmem [shape: bf16[8,256], index: 0, kind: input, shape index: {}]
  %s1 = inlined_call_operand.vmem [shape: bf16[256,128], index: 1, kind: input, shape index: {}]
  %s2 = inlined_call_operand.vmem [shape: f32[1,128], index: 2, kind: input, shape index: {}]
  %s3 = inlined_call_operand.vmem [shape: f32[8,128], index: 3, kind: output, shape index: {}]
  %s4 = sld [smem:[#allocation0]]
  $region22: #{fwd.7} parent=0
    _
  %s6 = ssub.s32 1, %s4
  %s7 = scalar_select 0, %s6, %s4
  // Predicated region
  $region2: #{fwd.7} parent=0 // pred_check
    _
  $region3: #{fwd.7} parent=0 // pred_check_branch
    %9 = sbr.rel (0) target = $region5
  $region4: #{fwd.7} parent=0 // pred_region
    _
  $region5: #{fwd.7} parent=0 // pred_fallthru
    _
  // Predicated region
  $region6: #{fwd.7} parent=0 // pred_check
    _
  $region7: #{fwd.7} parent=0 // pred_check_branch
    %11 = sbr.rel (0) target = $region9
  $region8: #{fwd.7} parent=0 // pred_region
    _
  $region9: #{fwd.7} parent=0 // pred_fallthru
    _
  // Predicated region
  $region10: #{fwd.7} parent=0 // pred_check
    _
  $region11: #{fwd.7} parent=0 // pred_check_branch
    %13 = sbr.rel (0) target = $region13
  $region12: #{fwd.7} parent=0 // pred_region
    _
  $region13: #{fwd.7} parent=0 // pred_fallthru
    _
  %v15 = vld [vmem:[%s0] sm:$0xff]
  %v16 = vld [vmem:[%s1] sm:$0xf]
  %v17 = vld [vmem:[%s1 + $0x4] sm:$0xf]
  %v18 = vld [vmem:[%s1 + $0x8] sm:$0xf]
  %v19 = vld [vmem:[%s1 + $0xc] sm:$0xf]
  %v20 = vld [vmem:[%s1 + $0x10] sm:$0xf]
  %v21 = vld [vmem:[%s1 + $0x14] sm:$0xf]
  %v22 = vld [vmem:[%s1 + $0x18] sm:$0xf]
  %v23 = vld [vmem:[%s1 + $0x1c] sm:$0xf]
  %v24 = vld [vmem:[%s1 + $0x20] sm:$0xf]
  %v25 = vld [vmem:[%s1 + $0x24] sm:$0xf]
  %v26 = vld [vmem:[%s1 + $0x28] sm:$0xf]
  %v27 = vld [vmem:[%s1 + $0x2c] sm:$0xf]
  %v28 = vld [vmem:[%s1 + $0x30] sm:$0xf]
  %v29 = vld [vmem:[%s1 + $0x34] sm:$0xf]
  %v30 = vld [vmem:[%s1 + $0x38] sm:$0xf]
  %v31 = vld [vmem:[%s1 + $0x3c] sm:$0xf]
  %v32 = vld [vmem:[%s1 + $0x40] sm:$0xf]
  %v33 = vld [vmem:[%s1 + $0x44] sm:$0xf]
  %v34 = vld [vmem:[%s1 + $0x48] sm:$0xf]
  %v35 = vld [vmem:[%s1 + $0x4c] sm:$0xf]
  %v36 = vld [vmem:[%s1 + $0x50] sm:$0xf]
  %v37 = vld [vmem:[%s1 + $0x54] sm:$0xf]
  %v38 = vld [vmem:[%s1 + $0x58] sm:$0xf]
  %v39 = vld [vmem:[%s1 + $0x5c] sm:$0xf]
  %v40 = vld [vmem:[%s1 + $0x60] sm:$0xf]
  %v41 = vld [vmem:[%s1 + $0x64] sm:$0xf]
  %v42 = vld [vmem:[%s1 + $0x68] sm:$0xf]
  %v43 = vld [vmem:[%s1 + $0x6c] sm:$0xf]
  %v44 = vld [vmem:[%s1 + $0x70] sm:$0xf]
  %v45 = vld [vmem:[%s1 + $0x74] sm:$0xf]
  %v46 = vld [vmem:[%s1 + $0x78] sm:$0xf]
  %v47 = vld [vmem:[%s1 + $0x7c] sm:$0xf]
  %v48 = vld [vmem:[%s2] sm:$0x1]
  %v50 = vlaneseq
  %v51 = vshrl.u32 %v50, 7
  %v52 = vsub.s32 0, %v51
  %v53 = vrot.slane %v48, %v52
  %v56 = vunpack.c.l.b16 %v15
  %v57 = vunpack.c.h.b16 %v15
  %v58 = vpack.c.b16 %v56, %v56
  %v59 = vpack.c.b16 %v57, %v57
  %v94 = vunpack.c.l.b16 %v16
  %v95 = vunpack.c.l.b16 %v17
  %v96 = vunpack.c.l.b16 %v18
  %v97 = vunpack.c.l.b16 %v19
  %v98 = vunpack.c.l.b16 %v20
  %v99 = vunpack.c.l.b16 %v21
  %v100 = vunpack.c.l.b16 %v22
  %v101 = vunpack.c.l.b16 %v23
  %v102 = vunpack.c.l.b16 %v24
  %v103 = vunpack.c.l.b16 %v25
  %v104 = vunpack.c.l.b16 %v26
  %v105 = vunpack.c.l.b16 %v27
  %v106 = vunpack.c.l.b16 %v28
  %v107 = vunpack.c.l.b16 %v29
  %v108 = vunpack.c.l.b16 %v30
  %v109 = vunpack.c.l.b16 %v31
  %v110 = vunpack.c.l.b16 %v32
  %v111 = vunpack.c.l.b16 %v33
  %v112 = vunpack.c.l.b16 %v34
  %v113 = vunpack.c.l.b16 %v35
  %v114 = vunpack.c.l.b16 %v36
  %v115 = vunpack.c.l.b16 %v37
  %v116 = vunpack.c.l.b16 %v38
  %v117 = vunpack.c.l.b16 %v39
  %v118 = vunpack.c.l.b16 %v40
  %v119 = vunpack.c.l.b16 %v41
  %v120 = vunpack.c.l.b16 %v42
  %v121 = vunpack.c.l.b16 %v43
  %v122 = vunpack.c.l.b16 %v44
  %v123 = vunpack.c.l.b16 %v45
  %v124 = vunpack.c.l.b16 %v46
  %v125 = vunpack.c.l.b16 %v47
  %v126 = vpack.c.b16 %v95, %v94
  %v127 = vpack.c.b16 %v97, %v96
  %v128 = vpack.c.b16 %v99, %v98
  %v129 = vpack.c.b16 %v101, %v100
  %v130 = vpack.c.b16 %v103, %v102
  %v131 = vpack.c.b16 %v105, %v104
  %v132 = vpack.c.b16 %v107, %v106
  %v133 = vpack.c.b16 %v109, %v108
  %v134 = vpack.c.b16 %v111, %v110
  %v135 = vpack.c.b16 %v113, %v112
  %v136 = vpack.c.b16 %v115, %v114
  %v137 = vpack.c.b16 %v117, %v116
  %v138 = vpack.c.b16 %v119, %v118
  %v139 = vpack.c.b16 %v121, %v120
  %v140 = vpack.c.b16 %v123, %v122
  %v141 = vpack.c.b16 %v125, %v124
  %158 = vmatprep.subr.bf16.mxu0 0
  %159 = vmatpush1.bf16.msra.mxu0 %v126
  %160 = vmatprep.subr.bf16.mxu0 0
  %161 = vmatpush1.bf16.msra.mxu0 %v127
  %162 = vmatprep.subr.bf16.mxu0 0
  %163 = vmatpush1.bf16.msra.mxu0 %v128
  %164 = vmatprep.subr.bf16.mxu0 0
  %165 = vmatpush1.bf16.msra.mxu0 %v129
  %166 = vmatprep.subr.bf16.mxu0 0
  %167 = vmatpush1.bf16.msra.mxu0 %v130
  %168 = vmatprep.subr.bf16.mxu0 0
  %169 = vmatpush1.bf16.msra.mxu0 %v131
  %170 = vmatprep.subr.bf16.mxu0 0
  %171 = vmatpush1.bf16.msra.mxu0 %v132
  %172 = vmatprep.subr.bf16.mxu0 0
  %173 = vmatpush1.bf16.msra.mxu0 %v133
  %174 = vmatprep.subr.bf16.mxu0 0
  %175 = vmatpush1.bf16.msra.mxu0 %v134
  %176 = vmatprep.subr.bf16.mxu0 0
  %177 = vmatpush1.bf16.msra.mxu0 %v135
  %178 = vmatprep.subr.bf16.mxu0 0
  %179 = vmatpush1.bf16.msra.mxu0 %v136
  %180 = vmatprep.subr.bf16.mxu0 0
  %181 = vmatpush1.bf16.msra.mxu0 %v137
  %182 = vmatprep.subr.bf16.mxu0 0
  %183 = vmatpush1.bf16.msra.mxu0 %v138
  %184 = vmatprep.subr.bf16.mxu0 0
  %185 = vmatpush1.bf16.msra.mxu0 %v139
  %186 = vmatprep.subr.bf16.mxu0 0
  %187 = vmatpush1.bf16.msra.mxu0 %v140
  %188 = vmatprep.subr.bf16.mxu0 0
  %189 = vmatpush1.bf16.msra.mxu0 %v141
  %190 = vmatprep.mubr.bf16.mxu0 %v59
  %191 = vmatmul.mubr.bf16.gmra.mrb[0].mxu0 %v58
  %v192 = vpop.f32.mrb[0].mxu0
  %v193 = vadd.f32 %v53, %v192
  %v194 = vpop.f32.mrb[0].mxu0
  %v195 = vpop.f32.mrb[0].mxu0
  %v196 = vpop.f32.mrb[0].mxu0
  %197 = vdwg.mxu0
  %198 = vst [vmem:[%s3] sm:$0xff] %v193
  // Predicated region
  $region14: #{fwd.7} parent=0 // pred_check
    _
  $region15: #{fwd.7} parent=0 // pred_check_branch
    %200 = sbr.rel (0) target = $region17
  $region16: #{fwd.7} parent=0 // pred_region
    _
  $region17: #{fwd.7} parent=0 // pred_fallthru
    _
  // Predicated region
  $region18: #{fwd.7} parent=0 // pred_check
    _
  $region19: #{fwd.7} parent=0 // pred_check_branch
    %202 = sbr.rel (0) target = $region21
  $region20: #{fwd.7} parent=0 // pred_region
    _
  $region21: #{fwd.7} parent=0 // pred_fallthru
    _

</llo_original>
